<compile_context>
chip_gen: v6e
topology: v6e:2x2x1
jax: 0.10.0
libtpu: 0.0.40
codegen_flags: <defaults>
</compile_context>

<pallas_src>
import jax
import jax.numpy as jnp
import numpy as np
from jax.experimental import pallas as pl
from jax.experimental.pallas import tpu as pltpu


def _make_ensemble_kernel(n_models, c_in, c_out, tile_l, chunk_l):
    """Build the fused ensemble kernel, closed over static geometry."""
    # Static lane-chunk schedule: bounds vreg pressure for large tile_l.
    chunks = []
    start = 0
    while start < tile_l:
        size = min(chunk_l, tile_l - start)
        chunks.append((start, size))
        start += size

    def kernel(x_ref, w_ref, b_ref, o_ref):
        # x_ref: (c_in,  tile_l) VMEM  - channels on sublanes, positions on lanes
        # w_ref: (n_models*c_in*c_out,) SMEM - flattened member weights
        # b_ref: (n_models*c_out,)      SMEM - flattened member biases
        # o_ref: (c_out, tile_l) VMEM  - ensemble-mean probabilities
        inv_m = 1.0 / n_models

        # Hoist every scalar weight/bias read (sregs) out of the lane loop.
        w_s = [[[w_ref[(m * c_in + ci) * c_out + co] for co in range(c_out)]
                for ci in range(c_in)] for m in range(n_models)]
        b_s = [[b_ref[m * c_out + co] for co in range(c_out)]
               for m in range(n_models)]

        for cstart, csize in chunks:
            x = x_ref[:, cstart:cstart + csize].astype(jnp.float32)  # (c_in, csize)
            xr = [x[ci:ci + 1, :] for ci in range(c_in)]             # (1, csize) rows
            acc = [jnp.zeros((1, csize), jnp.float32) for _ in range(c_out)]

            for m in range(n_models):
                # Conv1d(kernel_size=1): channel mix as VPU scalar FMAs.
                logits = []
                for co in range(c_out):
                    z = w_s[m][0][co] * xr[0]
                    for ci in range(1, c_in):
                        z = z + w_s[m][ci][co] * xr[ci]
                    logits.append(z + b_s[m][co])

                # Softmax over the c_out channel rows: elementwise max/exp/add.
                mx = logits[0]
                for co in range(1, c_out):
                    mx = jnp.maximum(mx, logits[co])
                es = [jnp.exp(l - mx) for l in logits]
                den = es[0]
                for co in range(1, c_out):
                    den = den + es[co]
                inv = pl.reciprocal(den, approx=False)
                for co in range(c_out):
                    acc[co] = acc[co] + es[co] * inv

            # torch.stack(outputs).mean(0)
            for co in range(c_out):
                o_ref[co:co + 1, cstart:cstart + csize] = (
                    acc[co] * inv_m).astype(o_ref.dtype)

    return kernel


def ensemble_forward(x_ncl, weights, biases, *, tile_l=8192, chunk_l=256):
    """Fused ensemble forward: mean_m softmax(W_m^T x + b_m) at every position.

    x_ncl:   (N, Cin, L)   channels-first input (PyTorch NCL convention)
    weights: (M, Cin, Cout) per-member Conv1d(k=1) weights
    biases:  (M, Cout)
    returns: (N, Cout, L)
    """
    N, Cin, L = x_ncl.shape
    M, Cin_w, Cout = weights.shape
    assert Cin_w == Cin and biases.shape == (M, Cout)

    # Lane tile along L. Large L -> fixed 128-multiple tile (pad remainder);
    # small L -> full-extent block (no 128-divisibility requirement).
    if L >= tile_l:
        TL = tile_l                              # multiple of 128
        L_pad = int(pl.cdiv(L, TL)) * TL
    else:
        TL = L
        L_pad = L

    x_p = x_ncl
    if L_pad != L:
        x_p = jnp.pad(x_ncl, ((0, 0), (0, 0), (0, L_pad - L)))

    kernel = _make_ensemble_kernel(M, Cin, Cout, TL, chunk_l)

    out = pl.pallas_call(
        kernel,
        out_shape=jax.ShapeDtypeStruct((N, Cout, L_pad), x_ncl.dtype),
        grid_spec=pltpu.PrefetchScalarGridSpec(
            num_scalar_prefetch=0,
            grid=(N, L_pad // TL),
            in_specs=[
                pl.BlockSpec((pl.Squeezed(), Cin, TL), lambda n, t: (n, 0, t)),
                pl.BlockSpec(memory_space=pltpu.MemorySpace.SMEM),
                pl.BlockSpec(memory_space=pltpu.MemorySpace.SMEM),
            ],
            out_specs=pl.BlockSpec((pl.Squeezed(), Cout, TL),
                                   lambda n, t: (n, 0, t)),
        ),
        compiler_params=pltpu.CompilerParams(
            dimension_semantics=("parallel", "parallel")),
    )(x_p, weights.reshape(-1), biases.reshape(-1))

    if L_pad != L:
        out = out[:, :, :L]
    return out


def ensemble_reference(x_ncl, weights, biases):
    """Pure-JAX reference of the same ensemble (for correctness check)."""
    x = jnp.transpose(x_ncl, (0, 2, 1))  # (N, L, Cin)
    outs = []
    for m in range(weights.shape[0]):
        logits = jnp.einsum("nlc,cd->nld", x, weights[m]) + biases[m]
        outs.append(jax.nn.softmax(logits, axis=-1))
    mean = jnp.mean(jnp.stack(outs), axis=0)  # stack(...).mean(0)
    return jnp.transpose(mean, (0, 2, 1))     # back to NCL


if __name__ == "__main__":
    key = jax.random.PRNGKey(0)
    k_x, k_w, k_b = jax.random.split(key, 3)

    # Small shapes: batch=2, in-channels=4 (one-hot ACGT-like), length=16,
    # 3 output classes (SpliceAI: none/acceptor/donor), 4 ensemble members.
    N, Cin, L, Cout, M = 2, 4, 16, 3, 4

    x = jax.random.normal(k_x, (N, Cin, L), dtype=jnp.float32)
    weights = 0.5 * jax.random.normal(k_w, (M, Cin, Cout), dtype=jnp.float32)
    biases = 0.1 * jax.random.normal(k_b, (M, Cout), dtype=jnp.float32)

    out = jax.block_until_ready(ensemble_forward(x, weights, biases))
    ref = jax.block_until_ready(ensemble_reference(x, weights, biases))

    np.testing.assert_allclose(np.asarray(out), np.asarray(ref),
                               rtol=1e-5, atol=1e-5)
    assert out.shape == (N, Cout, L)
    print("KERNEL_OK")
</pallas_src>

<mosaic_0001>
module attributes {stable_mosaic.version = 11 : i64} {
  func.func @kernel(%arg0: i32, %arg1: i32, %arg2: memref<1x4x16xf32, #tpu.memory_space<vmem>>, %arg3: memref<48xf32, #tpu.memory_space<smem>>, %arg4: memref<12xf32, #tpu.memory_space<smem>>, %arg5: memref<1x3x16xf32, #tpu.memory_space<vmem>>) attributes {dimension_semantics = [#tpu.dimension_semantics<parallel>, #tpu.dimension_semantics<parallel>], iteration_bounds = array<i64: 2, 1>, scalar_prefetch = 0 : i64, scratch_operands = 0 : i64, tpu.core_type = #tpu.core_type<tc>, window_params = [{transform_indices = @transform_0, window_bounds = array<i64: 1, 4, 16>}, {transform_indices = @transform_1, window_bounds = array<i64: 48>}, {transform_indices = @transform_2, window_bounds = array<i64: 12>}, {transform_indices = @transform_3, window_bounds = array<i64: 1, 3, 16>}]} {
    %c0 = arith.constant 0 : index
    %0 = memref.load %arg3[%c0] : memref<48xf32, #tpu.memory_space<smem>>
    %c1 = arith.constant 1 : index
    %1 = memref.load %arg3[%c1] : memref<48xf32, #tpu.memory_space<smem>>
    %c2 = arith.constant 2 : index
    %2 = memref.load %arg3[%c2] : memref<48xf32, #tpu.memory_space<smem>>
    %c3 = arith.constant 3 : index
    %3 = memref.load %arg3[%c3] : memref<48xf32, #tpu.memory_space<smem>>
    %c4 = arith.constant 4 : index
    %4 = memref.load %arg3[%c4] : memref<48xf32, #tpu.memory_space<smem>>
    %c5 = arith.constant 5 : index
    %5 = memref.load %arg3[%c5] : memref<48xf32, #tpu.memory_space<smem>>
    %c6 = arith.constant 6 : index
    %6 = memref.load %arg3[%c6] : memref<48xf32, #tpu.memory_space<smem>>
    %c7 = arith.constant 7 : index
    %7 = memref.load %arg3[%c7] : memref<48xf32, #tpu.memory_space<smem>>
    %c8 = arith.constant 8 : index
    %8 = memref.load %arg3[%c8] : memref<48xf32, #tpu.memory_space<smem>>
    %c9 = arith.constant 9 : index
    %9 = memref.load %arg3[%c9] : memref<48xf32, #tpu.memory_space<smem>>
    %c10 = arith.constant 10 : index
    %10 = memref.load %arg3[%c10] : memref<48xf32, #tpu.memory_space<smem>>
    %c11 = arith.constant 11 : index
    %11 = memref.load %arg3[%c11] : memref<48xf32, #tpu.memory_space<smem>>
    %c12 = arith.constant 12 : index
    %12 = memref.load %arg3[%c12] : memref<48xf32, #tpu.memory_space<smem>>
    %c13 = arith.constant 13 : index
    %13 = memref.load %arg3[%c13] : memref<48xf32, #tpu.memory_space<smem>>
    %c14 = arith.constant 14 : index
    %14 = memref.load %arg3[%c14] : memref<48xf32, #tpu.memory_space<smem>>
    %c15 = arith.constant 15 : index
    %15 = memref.load %arg3[%c15] : memref<48xf32, #tpu.memory_space<smem>>
    %c16 = arith.constant 16 : index
    %16 = memref.load %arg3[%c16] : memref<48xf32, #tpu.memory_space<smem>>
    %c17 = arith.constant 17 : index
    %17 = memref.load %arg3[%c17] : memref<48xf32, #tpu.memory_space<smem>>
    %c18 = arith.constant 18 : index
    %18 = memref.load %arg3[%c18] : memref<48xf32, #tpu.memory_space<smem>>
    %c19 = arith.constant 19 : index
    %19 = memref.load %arg3[%c19] : memref<48xf32, #tpu.memory_space<smem>>
    %c20 = arith.constant 20 : index
    %20 = memref.load %arg3[%c20] : memref<48xf32, #tpu.memory_space<smem>>
    %c21 = arith.constant 21 : index
    %21 = memref.load %arg3[%c21] : memref<48xf32, #tpu.memory_space<smem>>
    %c22 = arith.constant 22 : index
    %22 = memref.load %arg3[%c22] : memref<48xf32, #tpu.memory_space<smem>>
    %c23 = arith.constant 23 : index
    %23 = memref.load %arg3[%c23] : memref<48xf32, #tpu.memory_space<smem>>
    %c24 = arith.constant 24 : index
    %24 = memref.load %arg3[%c24] : memref<48xf32, #tpu.memory_space<smem>>
    %c25 = arith.constant 25 : index
    %25 = memref.load %arg3[%c25] : memref<48xf32, #tpu.memory_space<smem>>
    %c26 = arith.constant 26 : index
    %26 = memref.load %arg3[%c26] : memref<48xf32, #tpu.memory_space<smem>>
    %c27 = arith.constant 27 : index
    %27 = memref.load %arg3[%c27] : memref<48xf32, #tpu.memory_space<smem>>
    %c28 = arith.constant 28 : index
    %28 = memref.load %arg3[%c28] : memref<48xf32, #tpu.memory_space<smem>>
    %c29 = arith.constant 29 : index
    %29 = memref.load %arg3[%c29] : memref<48xf32, #tpu.memory_space<smem>>
    %c30 = arith.constant 30 : index
    %30 = memref.load %arg3[%c30] : memref<48xf32, #tpu.memory_space<smem>>
    %c31 = arith.constant 31 : index
    %31 = memref.load %arg3[%c31] : memref<48xf32, #tpu.memory_space<smem>>
    %c32 = arith.constant 32 : index
    %32 = memref.load %arg3[%c32] : memref<48xf32, #tpu.memory_space<smem>>
    %c33 = arith.constant 33 : index
    %33 = memref.load %arg3[%c33] : memref<48xf32, #tpu.memory_space<smem>>
    %c34 = arith.constant 34 : index
    %34 = memref.load %arg3[%c34] : memref<48xf32, #tpu.memory_space<smem>>
    %c35 = arith.constant 35 : index
    %35 = memref.load %arg3[%c35] : memref<48xf32, #tpu.memory_space<smem>>
    %c36 = arith.constant 36 : index
    %36 = memref.load %arg3[%c36] : memref<48xf32, #tpu.memory_space<smem>>
    %c37 = arith.constant 37 : index
    %37 = memref.load %arg3[%c37] : memref<48xf32, #tpu.memory_space<smem>>
    %c38 = arith.constant 38 : index
    %38 = memref.load %arg3[%c38] : memref<48xf32, #tpu.memory_space<smem>>
    %c39 = arith.constant 39 : index
    %39 = memref.load %arg3[%c39] : memref<48xf32, #tpu.memory_space<smem>>
    %c40 = arith.constant 40 : index
    %40 = memref.load %arg3[%c40] : memref<48xf32, #tpu.memory_space<smem>>
    %c41 = arith.constant 41 : index
    %41 = memref.load %arg3[%c41] : memref<48xf32, #tpu.memory_space<smem>>
    %c42 = arith.constant 42 : index
    %42 = memref.load %arg3[%c42] : memref<48xf32, #tpu.memory_space<smem>>
    %c43 = arith.constant 43 : index
    %43 = memref.load %arg3[%c43] : memref<48xf32, #tpu.memory_space<smem>>
    %c44 = arith.constant 44 : index
    %44 = memref.load %arg3[%c44] : memref<48xf32, #tpu.memory_space<smem>>
    %c45 = arith.constant 45 : index
    %45 = memref.load %arg3[%c45] : memref<48xf32, #tpu.memory_space<smem>>
    %c46 = arith.constant 46 : index
    %46 = memref.load %arg3[%c46] : memref<48xf32, #tpu.memory_space<smem>>
    %c47 = arith.constant 47 : index
    %47 = memref.load %arg3[%c47] : memref<48xf32, #tpu.memory_space<smem>>
    %c0_0 = arith.constant 0 : index
    %48 = memref.load %arg4[%c0_0] : memref<12xf32, #tpu.memory_space<smem>>
    %c1_1 = arith.constant 1 : index
    %49 = memref.load %arg4[%c1_1] : memref<12xf32, #tpu.memory_space<smem>>
    %c2_2 = arith.constant 2 : index
    %50 = memref.load %arg4[%c2_2] : memref<12xf32, #tpu.memory_space<smem>>
    %c3_3 = arith.constant 3 : index
    %51 = memref.load %arg4[%c3_3] : memref<12xf32, #tpu.memory_space<smem>>
    %c4_4 = arith.constant 4 : index
    %52 = memref.load %arg4[%c4_4] : memref<12xf32, #tpu.memory_space<smem>>
    %c5_5 = arith.constant 5 : index
    %53 = memref.load %arg4[%c5_5] : memref<12xf32, #tpu.memory_space<smem>>
    %c6_6 = arith.constant 6 : index
    %54 = memref.load %arg4[%c6_6] : memref<12xf32, #tpu.memory_space<smem>>
    %c7_7 = arith.constant 7 : index
    %55 = memref.load %arg4[%c7_7] : memref<12xf32, #tpu.memory_space<smem>>
    %c8_8 = arith.constant 8 : index
    %56 = memref.load %arg4[%c8_8] : memref<12xf32, #tpu.memory_space<smem>>
    %c9_9 = arith.constant 9 : index
    %57 = memref.load %arg4[%c9_9] : memref<12xf32, #tpu.memory_space<smem>>
    %c10_10 = arith.constant 10 : index
    %58 = memref.load %arg4[%c10_10] : memref<12xf32, #tpu.memory_space<smem>>
    %c11_11 = arith.constant 11 : index
    %59 = memref.load %arg4[%c11_11] : memref<12xf32, #tpu.memory_space<smem>>
    %c0_12 = arith.constant 0 : index
    %c0_13 = arith.constant 0 : index
    %c0_14 = arith.constant 0 : index
    %60 = vector.load %arg2[%c0_12, %c0_13, %c0_14] : memref<1x4x16xf32, #tpu.memory_space<vmem>>, vector<1x4x16xf32>
    %61 = vector.shape_cast %60 : vector<1x4x16xf32> to vector<4x16xf32>
    %62 = vector.extract_strided_slice %61 {offsets = [0, 0], sizes = [1, 16], strides = [1, 1]} : vector<4x16xf32> to vector<1x16xf32>
    %63 = vector.extract_strided_slice %61 {offsets = [1, 0], sizes = [1, 16], strides = [1, 1]} : vector<4x16xf32> to vector<1x16xf32>
    %64 = vector.extract_strided_slice %61 {offsets = [2, 0], sizes = [1, 16], strides = [1, 1]} : vector<4x16xf32> to vector<1x16xf32>
    %65 = vector.extract_strided_slice %61 {offsets = [3, 0], sizes = [1, 16], strides = [1, 1]} : vector<4x16xf32> to vector<1x16xf32>
    %cst = arith.constant 0.000000e+00 : f32
    %66 = vector.broadcast %cst : f32 to vector<1x16xf32>
    %cst_15 = arith.constant 0.000000e+00 : f32
    %67 = vector.broadcast %cst_15 : f32 to vector<1x16xf32>
    %cst_16 = arith.constant 0.000000e+00 : f32
    %68 = vector.broadcast %cst_16 : f32 to vector<1x16xf32>
    %69 = vector.broadcast %0 : f32 to vector<1x16xf32>
    %70 = arith.mulf %69, %62 : vector<1x16xf32>
    %71 = vector.broadcast %3 : f32 to vector<1x16xf32>
    %72 = arith.mulf %71, %63 : vector<1x16xf32>
    %73 = arith.addf %70, %72 : vector<1x16xf32>
    %74 = vector.broadcast %6 : f32 to vector<1x16xf32>
    %75 = arith.mulf %74, %64 : vector<1x16xf32>
    %76 = arith.addf %73, %75 : vector<1x16xf32>
    %77 = vector.broadcast %9 : f32 to vector<1x16xf32>
    %78 = arith.mulf %77, %65 : vector<1x16xf32>
    %79 = arith.addf %76, %78 : vector<1x16xf32>
    %80 = vector.broadcast %48 : f32 to vector<1x16xf32>
    %81 = arith.addf %79, %80 : vector<1x16xf32>
    %82 = vector.broadcast %1 : f32 to vector<1x16xf32>
    %83 = arith.mulf %82, %62 : vector<1x16xf32>
    %84 = vector.broadcast %4 : f32 to vector<1x16xf32>
    %85 = arith.mulf %84, %63 : vector<1x16xf32>
    %86 = arith.addf %83, %85 : vector<1x16xf32>
    %87 = vector.broadcast %7 : f32 to vector<1x16xf32>
    %88 = arith.mulf %87, %64 : vector<1x16xf32>
    %89 = arith.addf %86, %88 : vector<1x16xf32>
    %90 = vector.broadcast %10 : f32 to vector<1x16xf32>
    %91 = arith.mulf %90, %65 : vector<1x16xf32>
    %92 = arith.addf %89, %91 : vector<1x16xf32>
    %93 = vector.broadcast %49 : f32 to vector<1x16xf32>
    %94 = arith.addf %92, %93 : vector<1x16xf32>
    %95 = vector.broadcast %2 : f32 to vector<1x16xf32>
    %96 = arith.mulf %95, %62 : vector<1x16xf32>
    %97 = vector.broadcast %5 : f32 to vector<1x16xf32>
    %98 = arith.mulf %97, %63 : vector<1x16xf32>
    %99 = arith.addf %96, %98 : vector<1x16xf32>
    %100 = vector.broadcast %8 : f32 to vector<1x16xf32>
    %101 = arith.mulf %100, %64 : vector<1x16xf32>
    %102 = arith.addf %99, %101 : vector<1x16xf32>
    %103 = vector.broadcast %11 : f32 to vector<1x16xf32>
    %104 = arith.mulf %103, %65 : vector<1x16xf32>
    %105 = arith.addf %102, %104 : vector<1x16xf32>
    %106 = vector.broadcast %50 : f32 to vector<1x16xf32>
    %107 = arith.addf %105, %106 : vector<1x16xf32>
    %108 = arith.maximumf %81, %94 : vector<1x16xf32>
    %109 = arith.maximumf %108, %107 : vector<1x16xf32>
    %110 = arith.subf %81, %109 : vector<1x16xf32>
    %111 = math.exp %110 : vector<1x16xf32>
    %112 = arith.subf %94, %109 : vector<1x16xf32>
    %113 = math.exp %112 : vector<1x16xf32>
    %114 = arith.subf %107, %109 : vector<1x16xf32>
    %115 = math.exp %114 : vector<1x16xf32>
    %116 = arith.addf %111, %113 : vector<1x16xf32>
    %117 = arith.addf %116, %115 : vector<1x16xf32>
    %118 = tpu.reciprocal %117 : vector<1x16xf32> -> vector<1x16xf32>
    %119 = arith.mulf %111, %118 : vector<1x16xf32>
    %120 = arith.addf %66, %119 : vector<1x16xf32>
    %121 = arith.mulf %113, %118 : vector<1x16xf32>
    %122 = arith.addf %67, %121 : vector<1x16xf32>
    %123 = arith.mulf %115, %118 : vector<1x16xf32>
    %124 = arith.addf %68, %123 : vector<1x16xf32>
    %125 = vector.broadcast %12 : f32 to vector<1x16xf32>
    %126 = arith.mulf %125, %62 : vector<1x16xf32>
    %127 = vector.broadcast %15 : f32 to vector<1x16xf32>
    %128 = arith.mulf %127, %63 : vector<1x16xf32>
    %129 = arith.addf %126, %128 : vector<1x16xf32>
    %130 = vector.broadcast %18 : f32 to vector<1x16xf32>
    %131 = arith.mulf %130, %64 : vector<1x16xf32>
    %132 = arith.addf %129, %131 : vector<1x16xf32>
    %133 = vector.broadcast %21 : f32 to vector<1x16xf32>
    %134 = arith.mulf %133, %65 : vector<1x16xf32>
    %135 = arith.addf %132, %134 : vector<1x16xf32>
    %136 = vector.broadcast %51 : f32 to vector<1x16xf32>
    %137 = arith.addf %135, %136 : vector<1x16xf32>
    %138 = vector.broadcast %13 : f32 to vector<1x16xf32>
    %139 = arith.mulf %138, %62 : vector<1x16xf32>
    %140 = vector.broadcast %16 : f32 to vector<1x16xf32>
    %141 = arith.mulf %140, %63 : vector<1x16xf32>
    %142 = arith.addf %139, %141 : vector<1x16xf32>
    %143 = vector.broadcast %19 : f32 to vector<1x16xf32>
    %144 = arith.mulf %143, %64 : vector<1x16xf32>
    %145 = arith.addf %142, %144 : vector<1x16xf32>
    %146 = vector.broadcast %22 : f32 to vector<1x16xf32>
    %147 = arith.mulf %146, %65 : vector<1x16xf32>
    %148 = arith.addf %145, %147 : vector<1x16xf32>
    %149 = vector.broadcast %52 : f32 to vector<1x16xf32>
    %150 = arith.addf %148, %149 : vector<1x16xf32>
    %151 = vector.broadcast %14 : f32 to vector<1x16xf32>
    %152 = arith.mulf %151, %62 : vector<1x16xf32>
    %153 = vector.broadcast %17 : f32 to vector<1x16xf32>
    %154 = arith.mulf %153, %63 : vector<1x16xf32>
    %155 = arith.addf %152, %154 : vector<1x16xf32>
    %156 = vector.broadcast %20 : f32 to vector<1x16xf32>
    %157 = arith.mulf %156, %64 : vector<1x16xf32>
    %158 = arith.addf %155, %157 : vector<1x16xf32>
    %159 = vector.broadcast %23 : f32 to vector<1x16xf32>
    %160 = arith.mulf %159, %65 : vector<1x16xf32>
    %161 = arith.addf %158, %160 : vector<1x16xf32>
    %162 = vector.broadcast %53 : f32 to vector<1x16xf32>
    %163 = arith.addf %161, %162 : vector<1x16xf32>
    %164 = arith.maximumf %137, %150 : vector<1x16xf32>
    %165 = arith.maximumf %164, %163 : vector<1x16xf32>
    %166 = arith.subf %137, %165 : vector<1x16xf32>
    %167 = math.exp %166 : vector<1x16xf32>
    %168 = arith.subf %150, %165 : vector<1x16xf32>
    %169 = math.exp %168 : vector<1x16xf32>
    %170 = arith.subf %163, %165 : vector<1x16xf32>
    %171 = math.exp %170 : vector<1x16xf32>
    %172 = arith.addf %167, %169 : vector<1x16xf32>
    %173 = arith.addf %172, %171 : vector<1x16xf32>
    %174 = tpu.reciprocal %173 : vector<1x16xf32> -> vector<1x16xf32>
    %175 = arith.mulf %167, %174 : vector<1x16xf32>
    %176 = arith.addf %120, %175 : vector<1x16xf32>
    %177 = arith.mulf %169, %174 : vector<1x16xf32>
    %178 = arith.addf %122, %177 : vector<1x16xf32>
    %179 = arith.mulf %171, %174 : vector<1x16xf32>
    %180 = arith.addf %124, %179 : vector<1x16xf32>
    %181 = vector.broadcast %24 : f32 to vector<1x16xf32>
    %182 = arith.mulf %181, %62 : vector<1x16xf32>
    %183 = vector.broadcast %27 : f32 to vector<1x16xf32>
    %184 = arith.mulf %183, %63 : vector<1x16xf32>
    %185 = arith.addf %182, %184 : vector<1x16xf32>
    %186 = vector.broadcast %30 : f32 to vector<1x16xf32>
    %187 = arith.mulf %186, %64 : vector<1x16xf32>
    %188 = arith.addf %185, %187 : vector<1x16xf32>
    %189 = vector.broadcast %33 : f32 to vector<1x16xf32>
    %190 = arith.mulf %189, %65 : vector<1x16xf32>
    %191 = arith.addf %188, %190 : vector<1x16xf32>
    %192 = vector.broadcast %54 : f32 to vector<1x16xf32>
    %193 = arith.addf %191, %192 : vector<1x16xf32>
    %194 = vector.broadcast %25 : f32 to vector<1x16xf32>
    %195 = arith.mulf %194, %62 : vector<1x16xf32>
    %196 = vector.broadcast %28 : f32 to vector<1x16xf32>
    %197 = arith.mulf %196, %63 : vector<1x16xf32>
    %198 = arith.addf %195, %197 : vector<1x16xf32>
    %199 = vector.broadcast %31 : f32 to vector<1x16xf32>
    %200 = arith.mulf %199, %64 : vector<1x16xf32>
    %201 = arith.addf %198, %200 : vector<1x16xf32>
    %202 = vector.broadcast %34 : f32 to vector<1x16xf32>
    %203 = arith.mulf %202, %65 : vector<1x16xf32>
    %204 = arith.addf %201, %203 : vector<1x16xf32>
    %205 = vector.broadcast %55 : f32 to vector<1x16xf32>
    %206 = arith.addf %204, %205 : vector<1x16xf32>
    %207 = vector.broadcast %26 : f32 to vector<1x16xf32>
    %208 = arith.mulf %207, %62 : vector<1x16xf32>
    %209 = vector.broadcast %29 : f32 to vector<1x16xf32>
    %210 = arith.mulf %209, %63 : vector<1x16xf32>
    %211 = arith.addf %208, %210 : vector<1x16xf32>
    %212 = vector.broadcast %32 : f32 to vector<1x16xf32>
    %213 = arith.mulf %212, %64 : vector<1x16xf32>
    %214 = arith.addf %211, %213 : vector<1x16xf32>
    %215 = vector.broadcast %35 : f32 to vector<1x16xf32>
    %216 = arith.mulf %215, %65 : vector<1x16xf32>
    %217 = arith.addf %214, %216 : vector<1x16xf32>
    %218 = vector.broadcast %56 : f32 to vector<1x16xf32>
    %219 = arith.addf %217, %218 : vector<1x16xf32>
    %220 = arith.maximumf %193, %206 : vector<1x16xf32>
    %221 = arith.maximumf %220, %219 : vector<1x16xf32>
    %222 = arith.subf %193, %221 : vector<1x16xf32>
    %223 = math.exp %222 : vector<1x16xf32>
    %224 = arith.subf %206, %221 : vector<1x16xf32>
    %225 = math.exp %224 : vector<1x16xf32>
    %226 = arith.subf %219, %221 : vector<1x16xf32>
    %227 = math.exp %226 : vector<1x16xf32>
    %228 = arith.addf %223, %225 : vector<1x16xf32>
    %229 = arith.addf %228, %227 : vector<1x16xf32>
    %230 = tpu.reciprocal %229 : vector<1x16xf32> -> vector<1x16xf32>
    %231 = arith.mulf %223, %230 : vector<1x16xf32>
    %232 = arith.addf %176, %231 : vector<1x16xf32>
    %233 = arith.mulf %225, %230 : vector<1x16xf32>
    %234 = arith.addf %178, %233 : vector<1x16xf32>
    %235 = arith.mulf %227, %230 : vector<1x16xf32>
    %236 = arith.addf %180, %235 : vector<1x16xf32>
    %237 = vector.broadcast %36 : f32 to vector<1x16xf32>
    %238 = arith.mulf %237, %62 : vector<1x16xf32>
    %239 = vector.broadcast %39 : f32 to vector<1x16xf32>
    %240 = arith.mulf %239, %63 : vector<1x16xf32>
    %241 = arith.addf %238, %240 : vector<1x16xf32>
    %242 = vector.broadcast %42 : f32 to vector<1x16xf32>
    %243 = arith.mulf %242, %64 : vector<1x16xf32>
    %244 = arith.addf %241, %243 : vector<1x16xf32>
    %245 = vector.broadcast %45 : f32 to vector<1x16xf32>
    %246 = arith.mulf %245, %65 : vector<1x16xf32>
    %247 = arith.addf %244, %246 : vector<1x16xf32>
    %248 = vector.broadcast %57 : f32 to vector<1x16xf32>
    %249 = arith.addf %247, %248 : vector<1x16xf32>
    %250 = vector.broadcast %37 : f32 to vector<1x16xf32>
    %251 = arith.mulf %250, %62 : vector<1x16xf32>
    %252 = vector.broadcast %40 : f32 to vector<1x16xf32>
    %253 = arith.mulf %252, %63 : vector<1x16xf32>
    %254 = arith.addf %251, %253 : vector<1x16xf32>
    %255 = vector.broadcast %43 : f32 to vector<1x16xf32>
    %256 = arith.mulf %255, %64 : vector<1x16xf32>
    %257 = arith.addf %254, %256 : vector<1x16xf32>
    %258 = vector.broadcast %46 : f32 to vector<1x16xf32>
    %259 = arith.mulf %258, %65 : vector<1x16xf32>
    %260 = arith.addf %257, %259 : vector<1x16xf32>
    %261 = vector.broadcast %58 : f32 to vector<1x16xf32>
    %262 = arith.addf %260, %261 : vector<1x16xf32>
    %263 = vector.broadcast %38 : f32 to vector<1x16xf32>
    %264 = arith.mulf %263, %62 : vector<1x16xf32>
    %265 = vector.broadcast %41 : f32 to vector<1x16xf32>
    %266 = arith.mulf %265, %63 : vector<1x16xf32>
    %267 = arith.addf %264, %266 : vector<1x16xf32>
    %268 = vector.broadcast %44 : f32 to vector<1x16xf32>
    %269 = arith.mulf %268, %64 : vector<1x16xf32>
    %270 = arith.addf %267, %269 : vector<1x16xf32>
    %271 = vector.broadcast %47 : f32 to vector<1x16xf32>
    %272 = arith.mulf %271, %65 : vector<1x16xf32>
    %273 = arith.addf %270, %272 : vector<1x16xf32>
    %274 = vector.broadcast %59 : f32 to vector<1x16xf32>
    %275 = arith.addf %273, %274 : vector<1x16xf32>
    %276 = arith.maximumf %249, %262 : vector<1x16xf32>
    %277 = arith.maximumf %276, %275 : vector<1x16xf32>
    %278 = arith.subf %249, %277 : vector<1x16xf32>
    %279 = math.exp %278 : vector<1x16xf32>
    %280 = arith.subf %262, %277 : vector<1x16xf32>
    %281 = math.exp %280 : vector<1x16xf32>
    %282 = arith.subf %275, %277 : vector<1x16xf32>
    %283 = math.exp %282 : vector<1x16xf32>
    %284 = arith.addf %279, %281 : vector<1x16xf32>
    %285 = arith.addf %284, %283 : vector<1x16xf32>
    %286 = tpu.reciprocal %285 : vector<1x16xf32> -> vector<1x16xf32>
    %287 = arith.mulf %279, %286 : vector<1x16xf32>
    %288 = arith.addf %232, %287 : vector<1x16xf32>
    %289 = arith.mulf %281, %286 : vector<1x16xf32>
    %290 = arith.addf %234, %289 : vector<1x16xf32>
    %291 = arith.mulf %283, %286 : vector<1x16xf32>
    %292 = arith.addf %236, %291 : vector<1x16xf32>
    %cst_17 = arith.constant 2.500000e-01 : f32
    %293 = vector.broadcast %cst_17 : f32 to vector<1x16xf32>
    %294 = arith.mulf %288, %293 : vector<1x16xf32>
    %c0_18 = arith.constant 0 : index
    %c0_19 = arith.constant 0 : index
    %c0_20 = arith.constant 0 : index
    %295 = vector.load %arg5[%c0_18, %c0_19, %c0_20] : memref<1x3x16xf32, #tpu.memory_space<vmem>>, vector<1x1x16xf32>
    %296 = vector.shape_cast %295 : vector<1x1x16xf32> to vector<1x16xf32>
    %297 = vector.shape_cast %294 : vector<1x16xf32> to vector<1x1x16xf32>
    tpu.vector_store %arg5[%c0_18, %c0_19, %c0_20], %297 {strides = array<i32>} : memref<1x3x16xf32, #tpu.memory_space<vmem>>, vector<1x1x16xf32>,
    %cst_21 = arith.constant 2.500000e-01 : f32
    %298 = vector.broadcast %cst_21 : f32 to vector<1x16xf32>
    %299 = arith.mulf %290, %298 : vector<1x16xf32>
    %c0_22 = arith.constant 0 : index
    %c1_23 = arith.constant 1 : index
    %c0_24 = arith.constant 0 : index
    %300 = vector.load %arg5[%c0_22, %c1_23, %c0_24] : memref<1x3x16xf32, #tpu.memory_space<vmem>>, vector<1x1x16xf32>
    %301 = vector.shape_cast %300 : vector<1x1x16xf32> to vector<1x16xf32>
    %302 = vector.shape_cast %299 : vector<1x16xf32> to vector<1x1x16xf32>
    tpu.vector_store %arg5[%c0_22, %c1_23, %c0_24], %302 {strides = array<i32>} : memref<1x3x16xf32, #tpu.memory_space<vmem>>, vector<1x1x16xf32>,
    %cst_25 = arith.constant 2.500000e-01 : f32
    %303 = vector.broadcast %cst_25 : f32 to vector<1x16xf32>
    %304 = arith.mulf %292, %303 : vector<1x16xf32>
    %c0_26 = arith.constant 0 : index
    %c2_27 = arith.constant 2 : index
    %c0_28 = arith.constant 0 : index
    %305 = vector.load %arg5[%c0_26, %c2_27, %c0_28] : memref<1x3x16xf32, #tpu.memory_space<vmem>>, vector<1x1x16xf32>
    %306 = vector.shape_cast %305 : vector<1x1x16xf32> to vector<1x16xf32>
    %307 = vector.shape_cast %304 : vector<1x16xf32> to vector<1x1x16xf32>
    tpu.vector_store %arg5[%c0_26, %c2_27, %c0_28], %307 {strides = array<i32>} : memref<1x3x16xf32, #tpu.memory_space<vmem>>, vector<1x1x16xf32>,
    return
  }
  func.func @transform_0(%arg0: i32, %arg1: i32) -> (i32, i32, i32) {
    %c0_i32 = arith.constant 0 : i32
    %c0_i32_0 = arith.constant 0 : i32
    return %arg0, %c0_i32, %arg1 : i32, i32, i32
  }
  func.func @transform_1(%arg0: i32, %arg1: i32) -> i32 {
    %c0_i32 = arith.constant 0 : i32
    %c0_i32_0 = arith.constant 0 : i32
    return %c0_i32 : i32
  }
  func.func @transform_2(%arg0: i32, %arg1: i32) -> i32 {
    %c0_i32 = arith.constant 0 : i32
    %c0_i32_0 = arith.constant 0 : i32
    return %c0_i32 : i32
  }
  func.func @transform_3(%arg0: i32, %arg1: i32) -> (i32, i32, i32) {
    %c0_i32 = arith.constant 0 : i32
    %c0_i32_0 = arith.constant 0 : i32
    return %arg0, %c0_i32, %arg1 : i32, i32, i32
  }
}

</mosaic_0001>

<llo_original>
// kernel: tpu_custom_call.1
$region0: #{tpu_custom_call.1}
  #allocation0 [shape = 'u32[]', space=smem, size = 0x4, offset = 0x4, fixed_abs, tag = 'smem constant byte address 0x4 - core index']
  #allocation1 [shape = 'u32[144,128]{1,0:T(1,128)}', space=vmem, size = 0x12000, scoped, tag = 'internal scratch']
  %s0 = inlined_call_operand.hbm [shape: f32[2,4,16], index: 0, kind: input, shape index: {}]
  %s1 = inlined_call_operand.vmem [shape: f32[48], index: 1, kind: input, shape index: {}]
  %s2 = inlined_call_operand.vmem [shape: f32[12], index: 2, kind: input, shape index: {}]
  %s3 = inlined_call_operand.vmem [shape: f32[2,3,16], index: 3, kind: output, shape index: {}]
  %s4 = sld [smem:[#allocation0]]
  $region57: #{tpu_custom_call.1} parent=0
    _
  %s6 = ssub.s32 1, %s4
  %s7 = scalar_select 0, %s6, %s4
  $region1: #{tpu_custom_call.1} parent=0
    #allocation2 [shape = 'u8[4096]{0}', space=vmem, size = 0x1000, scoped, tag = 'input window, operand 0']
    #allocation3 [shape = 's32[2]{0}', space=sflag, size = 0x8, scoped, tag = 'scoped memory for tpu_custom_call.1']
    #allocation4 [shape = 's32[2]{0}', space=sflag, size = 0x8, scoped, tag = 'scoped memory for tpu_custom_call.1']
    #allocation5 [shape = 'u8[512]{0}', space=smem, size = 0x200, scoped, tag = 'input window, operand 1, single buffered']
    #allocation6 [shape = 'u8[512]{0}', space=smem, size = 0x200, scoped, tag = 'input window, operand 2, single buffered']
    #allocation7 [shape = 's32[1]{0}', space=sflag, size = 0x4, scoped, tag = 'scoped memory for tpu_custom_call.1']
    %8 = vsyncpa [#allocation3], 0
    %s9 = scalar_lea.sflag [#allocation3], 1
    %10 = vsyncpa %s9, 0
    %11 = vsyncpa [#allocation4], 0
    %12 = vsyncpa [#allocation7], 0
    loop: start=0, step=1, limit=4
    $region2: #{tpu_custom_call.1} parent=1 // loop_pre_header
      _
    $region3: #{tpu_custom_call.1} parent=1 // loop_header
      %s14 = sphi 0, %s18
      %p15 = scmp.ge.s32.totalorder %s14, 4
      %s21 = sphi 0, %s33
      %s22 = sphi 0, %s29
      %s23 = sphi 0, %s21
      %s24 = sphi 0, %s22
      %s25 = sphi 0, %s23
      %s26 = sphi 0, %s24
      %s38 = sphi 0, %s40
      %s41 = sphi 0, %s38
      %s42 = sphi 0, %s41
      %s58 = sphi 0, %s42
      %s62 = sphi 0, %s62
      %s64 = sphi 0, %s62
      %s65 = sphi 0, %s64
      %s79 = sphi 0, %s65
      %s83 = sphi 0, %s83
      %s85 = sphi 0, %s83
      %s86 = sphi 0, %s85
      %s100 = sphi 0, %s86
      %s108 = sphi 0, %s110
      %s111 = sphi 0, %s108
      %s112 = sphi 0, %s111
      %s128 = sphi 0, %s112
    $region4: #{tpu_custom_call.1} parent=1 // loop_header_branch
      %17 = sbr.rel (%p15) target = $region8
    $region5: #{tpu_custom_call.1} parent=1 // loop_body
      %s19 = ssub.s32 %s14, 1
      %s20 = ssub.s32 %s14, 2
      %s27 = sadd.s32 1, %s22
      %p28 = scmp.ge.s32.totalorder %s27, 1
      %s29 = scalar_select %p28, 0, %s27
      %s30 = sadd.s32 1, %s21
      %s31 = scalar_select %p28, %s30, %s21
      %p32 = scmp.ge.s32.totalorder %s31, 2
      %s33 = scalar_select %p32, 0, %s31
      %s34 = ssub.s32 %s21, %s33
      %s35 = ssub.s32 %s22, %s29
      %s36 = sor.u32 %s34, %s35
      %p37 = scmp.eq.s32.totalorder %s36, 0
      %s39 = sadd.s32 %s38, 1
      %s40 = scalar_select %p37, %s38, %s39
      %p43 = pneg %p37
      %p44 = scmp.eq.s32.totalorder %s14, 1
      %p45 = por %p43, %p44
      %p46 = scmp.ne.s32.totalorder %s38, %s41
      %p47 = scmp.eq.s32.totalorder %s14, 0
      %p48 = por %p46, %p47
      %p49 = scmp.ne.s32.totalorder %s38, %s41
      %p50 = scmp.eq.s32.totalorder %s19, 1
      %p51 = por %p49, %p50
      %p52 = scmp.ne.s32.totalorder %s41, %s42
      %p53 = scmp.eq.s32.totalorder %s19, 0
      %p54 = por %p52, %p53
      %p55 = scmp.ne.s32.totalorder %s41, %s42
      %p56 = scmp.eq.s32.totalorder %s20, 1
      %p57 = por %p55, %p56
      %p59 = scmp.ne.s32.totalorder %s42, %s58
      %p60 = scmp.eq.s32.totalorder %s20, 0
      %p61 = por %p59, %p60
      %s63 = sadd.s32 %s62, 1
      %p66 = scmp.eq.s32.totalorder %s14, 1
      %p67 = scmp.ne.s32.totalorder %s62, %s64
      %p68 = scmp.eq.s32.totalorder %s14, 0
      %p69 = por %p67, %p68
      %p70 = scmp.ne.s32.totalorder %s62, %s64
      %p71 = scmp.eq.s32.totalorder %s19, 1
      %p72 = por %p70, %p71
      %p73 = scmp.ne.s32.totalorder %s64, %s65
      %p74 = scmp.eq.s32.totalorder %s19, 0
      %p75 = por %p73, %p74
      %p76 = scmp.ne.s32.totalorder %s64, %s65
      %p77 = scmp.eq.s32.totalorder %s20, 1
      %p78 = por %p76, %p77
      %p80 = scmp.ne.s32.totalorder %s65, %s79
      %p81 = scmp.eq.s32.totalorder %s20, 0
      %p82 = por %p80, %p81
      %s84 = sadd.s32 %s83, 1
      %p87 = scmp.eq.s32.totalorder %s14, 1
      %p88 = scmp.ne.s32.totalorder %s83, %s85
      %p89 = scmp.eq.s32.totalorder %s14, 0
      %p90 = por %p88, %p89
      %p91 = scmp.ne.s32.totalorder %s83, %s85
      %p92 = scmp.eq.s32.totalorder %s19, 1
      %p93 = por %p91, %p92
      %p94 = scmp.ne.s32.totalorder %s85, %s86
      %p95 = scmp.eq.s32.totalorder %s19, 0
      %p96 = por %p94, %p95
      %p97 = scmp.ne.s32.totalorder %s85, %s86
      %p98 = scmp.eq.s32.totalorder %s20, 1
      %p99 = por %p97, %p98
      %p101 = scmp.ne.s32.totalorder %s86, %s100
      %p102 = scmp.eq.s32.totalorder %s20, 0
      %p103 = por %p101, %p102
      %s104 = ssub.s32 %s21, %s33
      %s105 = ssub.s32 %s22, %s29
      %s106 = sor.u32 %s104, %s105
      %p107 = scmp.eq.s32.totalorder %s106, 0
      %s109 = sadd.s32 %s108, 1
      %s110 = scalar_select %p107, %s108, %s109
      %p113 = pneg %p107
      %p114 = scmp.eq.s32.totalorder %s14, 1
      %p115 = por %p113, %p114
      %p116 = scmp.ne.s32.totalorder %s108, %s111
      %p117 = scmp.eq.s32.totalorder %s14, 0
      %p118 = por %p116, %p117
      %p119 = scmp.ne.s32.totalorder %s108, %s111
      %p120 = scmp.eq.s32.totalorder %s19, 1
      %p121 = por %p119, %p120
      %p122 = scmp.ne.s32.totalorder %s111, %s112
      %p123 = scmp.eq.s32.totalorder %s19, 0
      %p124 = por %p122, %p123
      %p125 = scmp.ne.s32.totalorder %s111, %s112
      %p126 = scmp.eq.s32.totalorder %s20, 1
      %p127 = por %p125, %p126
      %p129 = scmp.ne.s32.totalorder %s112, %s128
      %p130 = scmp.eq.s32.totalorder %s20, 0
      %p131 = por %p129, %p130
      %p132 = scmp.le.s32.totalorder 1, %s14
      %p133 = scmp.lt.s32.totalorder %s14, 3
      %p134 = pnand %p132, %p133
      %p135 = pneg %p134
      // Predicated region
      $region9: #{tpu_custom_call.1} parent=5 // pred_check
        _
      $region10: #{tpu_custom_call.1} parent=5 // pred_check_branch
        %137 = sbr.rel (%p134) target = $region12
      $region11: #{tpu_custom_call.1} parent=5 // pred_region
        %s138 = ssub.s32 %s14, 1
        // Predicated region
        $region13: #{tpu_custom_call.1} parent=11 // pred_check
          %p139 = pneg %p75
        $region14: #{tpu_custom_call.1} parent=11 // pred_check_branch
          %141 = sbr.rel (%p139) target = $region16
        $region15: #{tpu_custom_call.1} parent=11 // pred_region
          %s143 = ssub.s32 16, 16
          %144 = vsyncadd [#allocation4], %s143
          %s146 = sshll.u32 %s1, 4
          %s147 = int_to_ptr.vmem [resolvable:$true] %s146
          %149 = dma.vmem_to_smem %s147, 16, [#allocation5], [#allocation4]
        $region16: #{tpu_custom_call.1} parent=11 // pred_fallthru
          _
        // Predicated region
        $region17: #{tpu_custom_call.1} parent=11 // pred_check
          %p150 = pneg %p96
        $region18: #{tpu_custom_call.1} parent=11 // pred_check_branch
          %152 = sbr.rel (%p150) target = $region20
        $region19: #{tpu_custom_call.1} parent=11 // pred_region
          %s154 = ssub.s32 16, 16
          %155 = vsyncadd [#allocation7], %s154
          %s157 = sshll.u32 %s2, 4
          %s158 = int_to_ptr.vmem [resolvable:$true] %s157
          %160 = dma.vmem_to_smem %s158, 16, [#allocation6], [#allocation7]
        $region20: #{tpu_custom_call.1} parent=11 // pred_fallthru
          _
      $region12: #{tpu_custom_call.1} parent=5 // pred_fallthru
        _
      %p161 = scmp.lt.s32.totalorder %s14, 2
      // Predicated region
      $region21: #{tpu_custom_call.1} parent=5 // pred_check
        %p162 = pneg %p161
      $region22: #{tpu_custom_call.1} parent=5 // pred_check_branch
        %164 = sbr.rel (%p162) target = $region24
      $region23: #{tpu_custom_call.1} parent=5 // pred_region
        // Predicated region
        $region25: #{tpu_custom_call.1} parent=23 // pred_check
          %p165 = pneg %p48
        $region26: #{tpu_custom_call.1} parent=23 // pred_check_branch
          %167 = sbr.rel (%p165) target = $region28
        $region27: #{tpu_custom_call.1} parent=23 // pred_region
          %s168 = sand.u32 %s38, 1
          %s169 = scalar_lea.sflag [#allocation3], %s168
          %s170 = sand.u32 %s38, 1
          %s171 = smul.addr %s170, 4
          %s172 = scalar_lea.vmem [#allocation2], %s171
          %s174 = ssub.s32 64, 64
          %175 = vsyncadd %s169, %s174
          %s176 = sadd.s32 %s22, %s21
          %s177 = smul.addr %s176, 64
          %s178 = scalar_lea.hbm %s0, %s177
          %s180 = sshll.u32 %s172, 4
          %s181 = int_to_ptr.vmem [resolvable:$true] %s180
          %183 = dma.hbm_to_vmem [thread:$0]  %s178, 64, %s181, %s169
        $region28: #{tpu_custom_call.1} parent=23 // pred_fallthru
          _
      $region24: #{tpu_custom_call.1} parent=5 // pred_fallthru
        _
      %p184 = scmp.le.s32.totalorder 1, %s14
      %p185 = scmp.lt.s32.totalorder %s14, 3
      %p186 = pnand %p184, %p185
      %p187 = pneg %p186
      // Predicated region
      $region29: #{tpu_custom_call.1} parent=5 // pred_check
        _
      $region30: #{tpu_custom_call.1} parent=5 // pred_check_branch
        %189 = sbr.rel (%p186) target = $region32
      $region31: #{tpu_custom_call.1} parent=5 // pred_region
        %s190 = ssub.s32 %s14, 1
        %s191 = sand.u32 %s41, 1
        %s192 = scalar_lea.sflag [#allocation3], %s191
        %s193 = sand.u32 %s41, 1
        %s194 = smul.addr %s193, 4
        %s195 = scalar_lea.vmem [#allocation2], %s194
        // Predicated region
        $region33: #{tpu_custom_call.1} parent=31 // pred_check
          %p196 = pneg %p54
        $region34: #{tpu_custom_call.1} parent=31 // pred_check_branch
          %198 = sbr.rel (%p196) target = $region36
        $region35: #{tpu_custom_call.1} parent=31 // pred_region
          %199 = dma.done %s192, 64
        $region36: #{tpu_custom_call.1} parent=31 // pred_fallthru
          _
        // Predicated region
        $region37: #{tpu_custom_call.1} parent=31 // pred_check
          %p200 = pneg %p75
        $region38: #{tpu_custom_call.1} parent=31 // pred_check_branch
          %202 = sbr.rel (%p200) target = $region40
        $region39: #{tpu_custom_call.1} parent=31 // pred_region
          %203 = dma.done [#allocation4], 16
        $region40: #{tpu_custom_call.1} parent=31 // pred_fallthru
          _
        // Predicated region
        $region41: #{tpu_custom_call.1} parent=31 // pred_check
          %p204 = pneg %p96
        $region42: #{tpu_custom_call.1} parent=31 // pred_check_branch
          %206 = sbr.rel (%p204) target = $region44
        $region43: #{tpu_custom_call.1} parent=31 // pred_region
          %207 = dma.done [#allocation7], 16
        $region44: #{tpu_custom_call.1} parent=31 // pred_fallthru
          _
        %208 = sfence
        %s209 = sand.u32 %s41, 1
        %s210 = scalar_lea.sflag [#allocation3], %s209
        %s211 = sand.u32 %s41, 1
        %s212 = smul.addr %s211, 4
        %s213 = scalar_lea.vmem [#allocation2], %s212
        %p214 = pneg %p54
        %p215 = pneg %p51
        %p216 = pneg %p75
        %p217 = pneg %p72
        %p218 = pneg %p96
        %p219 = pneg %p93
        %p220 = pneg %p124
        %p221 = pneg %p121
        %p222 = scmp.lt.s32.totalorder %s23, 1
        %s223 = scalar_select %p222, %s23, 1
        %p224 = scmp.lt.s32.totalorder %s24, 0
        %s225 = scalar_select %p224, %s24, 0
        %s226 = sadd.s32 %s225, %s223
        %s227 = smul.addr %s226, 4
        %s228 = scalar_lea.vmem %s3, %s227
        %p229 = scmp.lt.s32.totalorder %s23, 1
        %s230 = scalar_select %p229, %s23, 1
        %p231 = scmp.lt.s32.totalorder %s24, 0
        %s232 = scalar_select %p231, %s24, 0
        %s233 = sadd.s32 %s232, %s230
        %s234 = smul.addr %s233, 4
        %s235 = scalar_lea.vmem %s3, %s234
        %s236 = sld [smem:[#allocation5]]
        %s237 = sld [smem:[#allocation5 + $0x1]]
        %s238 = sld [smem:[#allocation5 + $0x2]]
        %s239 = sld [smem:[#allocation5 + $0x3]]
        %s240 = sld [smem:[#allocation5 + $0x4]]
        %s241 = sld [smem:[#allocation5 + $0x5]]
        %s242 = sld [smem:[#allocation5 + $0x6]]
        %s243 = sld [smem:[#allocation5 + $0x7]]
        %s244 = sld [smem:[#allocation5 + $0x8]]
        %s245 = sld [smem:[#allocation5 + $0x9]]
        %s246 = sld [smem:[#allocation5 + $0xa]]
        %s247 = sld [smem:[#allocation5 + $0xb]]
        %s248 = sld [smem:[#allocation5 + $0xc]]
        %s249 = sld [smem:[#allocation5 + $0xd]]
        %s250 = sld [smem:[#allocation5 + $0xe]]
        %s251 = sld [smem:[#allocation5 + $0xf]]
        %s252 = sld [smem:[#allocation5 + $0x10]]
        %s253 = sld [smem:[#allocation5 + $0x11]]
        %s254 = sld [smem:[#allocation5 + $0x12]]
        %s255 = sld [smem:[#allocation5 + $0x13]]
        %s256 = sld [smem:[#allocation5 + $0x14]]
        %s257 = sld [smem:[#allocation5 + $0x15]]
        %s258 = sld [smem:[#allocation5 + $0x16]]
        %s259 = sld [smem:[#allocation5 + $0x17]]
        %s260 = sld [smem:[#allocation5 + $0x18]]
        %s261 = sld [smem:[#allocation5 + $0x19]]
        %s262 = sld [smem:[#allocation5 + $0x1a]]
        %s263 = sld [smem:[#allocation5 + $0x1b]]
        %s264 = sld [smem:[#allocation5 + $0x1c]]
        %s265 = sld [smem:[#allocation5 + $0x1d]]
        %s266 = sld [smem:[#allocation5 + $0x1e]]
        %s267 = sld [smem:[#allocation5 + $0x1f]]
        %s268 = sld [smem:[#allocation5 + $0x20]]
        %s269 = sld [smem:[#allocation5 + $0x21]]
        %s270 = sld [smem:[#allocation5 + $0x22]]
        %s271 = sld [smem:[#allocation5 + $0x23]]
        %s272 = sld [smem:[#allocation5 + $0x24]]
        %s273 = sld [smem:[#allocation5 + $0x25]]
        %s274 = sld [smem:[#allocation5 + $0x26]]
        %s275 = sld [smem:[#allocation5 + $0x27]]
        %s276 = sld [smem:[#allocation5 + $0x28]]
        %s277 = sld [smem:[#allocation5 + $0x29]]
        %s278 = sld [smem:[#allocation5 + $0x2a]]
        %s279 = sld [smem:[#allocation5 + $0x2b]]
        %s280 = sld [smem:[#allocation5 + $0x2c]]
        %s281 = sld [smem:[#allocation5 + $0x2d]]
        %s282 = sld [smem:[#allocation5 + $0x2e]]
        %s283 = sld [smem:[#allocation5 + $0x2f]]
        %s284 = sld [smem:[#allocation6]]
        %s285 = sld [smem:[#allocation6 + $0x1]]
        %s286 = sld [smem:[#allocation6 + $0x2]]
        %s287 = sld [smem:[#allocation6 + $0x3]]
        %s288 = sld [smem:[#allocation6 + $0x4]]
        %s289 = sld [smem:[#allocation6 + $0x5]]
        %s290 = sld [smem:[#allocation6 + $0x6]]
        %s291 = sld [smem:[#allocation6 + $0x7]]
        %s292 = sld [smem:[#allocation6 + $0x8]]
        %s293 = sld [smem:[#allocation6 + $0x9]]
        %s294 = sld [smem:[#allocation6 + $0xa]]
        %s295 = sld [smem:[#allocation6 + $0xb]]
        %v296 = vld [vmem:[%s195] sm:$0xf]
        %v297 = vstv %s236
        %v298 = vmul.f32 %v297, %v296
        %v299 = vstv %s239
        %v300 = vmul.f32 %v299, %v296
        %v302 = vrot.slane %v300, 1
        %v304 = vadd.f32 %v298, %v302
        %v305 = vstv %s242
        %v306 = vmul.f32 %v305, %v296
        %v308 = vrot.slane %v306, 2
        %v310 = vadd.f32 %v304, %v308
        %v311 = vstv %s245
        %v312 = vmul.f32 %v311, %v296
        %v314 = vrot.slane %v312, 3
        %v316 = vadd.f32 %v310, %v314
        %v317 = vstv %s284
        %v318 = vadd.f32 %v316, %v317
        %v319 = vstv %s237
        %v320 = vmul.f32 %v319, %v296
        %v321 = vstv %s240
        %v322 = vmul.f32 %v321, %v296
        %v324 = vrot.slane %v322, 1
        %v326 = vadd.f32 %v320, %v324
        %v327 = vstv %s243
        %v328 = vmul.f32 %v327, %v296
        %v330 = vrot.slane %v328, 2
        %v332 = vadd.f32 %v326, %v330
        %v333 = vstv %s246
        %v334 = vmul.f32 %v333, %v296
        %v336 = vrot.slane %v334, 3
        %v338 = vadd.f32 %v332, %v336
        %v339 = vstv %s285
        %v340 = vadd.f32 %v338, %v339
        %v341 = vstv %s238
        %v342 = vmul.f32 %v341, %v296
        %v343 = vstv %s241
        %v344 = vmul.f32 %v343, %v296
        %v346 = vrot.slane %v344, 1
        %v348 = vadd.f32 %v342, %v346
        %v349 = vstv %s244
        %v350 = vmul.f32 %v349, %v296
        %v352 = vrot.slane %v350, 2
        %v354 = vadd.f32 %v348, %v352
        %v355 = vstv %s247
        %v356 = vmul.f32 %v355, %v296
        %v358 = vrot.slane %v356, 3
        %v360 = vadd.f32 %v354, %v358
        %v361 = vstv %s286
        %v362 = vadd.f32 %v360, %v361
        %v363 = vmax.f32 %v318, %v340
        %v364 = vmax.f32 %v363, %v362
        %v365 = vsub.f32 %v318, %v364
        %v366 = vmul.f32 %v365, 1.442695
        %v367 = vpow.pop %v366
        %v368 = vsub.f32 %v340, %v364
        %v369 = vmul.f32 %v368, 1.442695
        %v370 = vpow.pop %v369
        %v371 = vsub.f32 %v362, %v364
        %v372 = vmul.f32 %v371, 1.442695
        %v373 = vpow.pop %v372
        %v374 = vadd.f32 %v367, %v370
        %v375 = vadd.f32 %v374, %v373
        %v376 = vrcp.pop %v375
        %v377 = vmul.f32 %v367, %v376
        %v378 = vadd.f32 %v377, 0.0
        %v379 = vmul.f32 %v370, %v376
        %v380 = vadd.f32 %v379, 0.0
        %v381 = vmul.f32 %v373, %v376
        %v382 = vadd.f32 %v381, 0.0
        %v383 = vstv %s248
        %v384 = vmul.f32 %v383, %v296
        %v385 = vstv %s251
        %v386 = vmul.f32 %v385, %v296
        %v388 = vrot.slane %v386, 1
        %v390 = vadd.f32 %v384, %v388
        %v391 = vstv %s254
        %v392 = vmul.f32 %v391, %v296
        %v394 = vrot.slane %v392, 2
        %v396 = vadd.f32 %v390, %v394
        %v397 = vstv %s257
        %v398 = vmul.f32 %v397, %v296
        %v400 = vrot.slane %v398, 3
        %v402 = vadd.f32 %v396, %v400
        %v403 = vstv %s287
        %v404 = vadd.f32 %v402, %v403
        %v405 = vstv %s249
        %v406 = vmul.f32 %v405, %v296
        %v407 = vstv %s252
        %v408 = vmul.f32 %v407, %v296
        %v410 = vrot.slane %v408, 1
        %v412 = vadd.f32 %v406, %v410
        %v413 = vstv %s255
        %v414 = vmul.f32 %v413, %v296
        %v416 = vrot.slane %v414, 2
        %v418 = vadd.f32 %v412, %v416
        %v419 = vstv %s258
        %v420 = vmul.f32 %v419, %v296
        %v422 = vrot.slane %v420, 3
        %v424 = vadd.f32 %v418, %v422
        %v425 = vstv %s288
        %v426 = vadd.f32 %v424, %v425
        %v427 = vstv %s250
        %v428 = vmul.f32 %v427, %v296
        %v429 = vstv %s253
        %v430 = vmul.f32 %v429, %v296
        %v432 = vrot.slane %v430, 1
        %v434 = vadd.f32 %v428, %v432
        %v435 = vstv %s256
        %v436 = vmul.f32 %v435, %v296
        %v438 = vrot.slane %v436, 2
        %v440 = vadd.f32 %v434, %v438
        %v441 = vstv %s259
        %v442 = vmul.f32 %v441, %v296
        %v444 = vrot.slane %v442, 3
        %v446 = vadd.f32 %v440, %v444
        %v447 = vstv %s289
        %v448 = vadd.f32 %v446, %v447
        %v449 = vmax.f32 %v404, %v426
        %v450 = vmax.f32 %v449, %v448
        %v451 = vsub.f32 %v404, %v450
        %v452 = vmul.f32 %v451, 1.442695
        %v453 = vpow.pop %v452
        %v454 = vsub.f32 %v426, %v450
        %v455 = vmul.f32 %v454, 1.442695
        %v456 = vpow.pop %v455
        %v457 = vsub.f32 %v448, %v450
        %v458 = vmul.f32 %v457, 1.442695
        %v459 = vpow.pop %v458
        %v460 = vadd.f32 %v453, %v456
        %v461 = vadd.f32 %v460, %v459
        %v462 = vrcp.pop %v461
        %v463 = vmul.f32 %v453, %v462
        %v464 = vadd.f32 %v378, %v463
        %v465 = vmul.f32 %v456, %v462
        %v466 = vadd.f32 %v380, %v465
        %v467 = vmul.f32 %v459, %v462
        %v468 = vadd.f32 %v382, %v467
        %v469 = vstv %s260
        %v470 = vmul.f32 %v469, %v296
        %v471 = vstv %s263
        %v472 = vmul.f32 %v471, %v296
        %v474 = vrot.slane %v472, 1
        %v476 = vadd.f32 %v470, %v474
        %v477 = vstv %s266
        %v478 = vmul.f32 %v477, %v296
        %v480 = vrot.slane %v478, 2
        %v482 = vadd.f32 %v476, %v480
        %v483 = vstv %s269
        %v484 = vmul.f32 %v483, %v296
        %v486 = vrot.slane %v484, 3
        %v488 = vadd.f32 %v482, %v486
        %v489 = vstv %s290
        %v490 = vadd.f32 %v488, %v489
        %v491 = vstv %s261
        %v492 = vmul.f32 %v491, %v296
        %v493 = vstv %s264
        %v494 = vmul.f32 %v493, %v296
        %v496 = vrot.slane %v494, 1
        %v498 = vadd.f32 %v492, %v496
        %v499 = vstv %s267
        %v500 = vmul.f32 %v499, %v296
        %v502 = vrot.slane %v500, 2
        %v504 = vadd.f32 %v498, %v502
        %v505 = vstv %s270
        %v506 = vmul.f32 %v505, %v296
        %v508 = vrot.slane %v506, 3
        %v510 = vadd.f32 %v504, %v508
        %v511 = vstv %s291
        %v512 = vadd.f32 %v510, %v511
        %v513 = vstv %s262
        %v514 = vmul.f32 %v513, %v296
        %v515 = vstv %s265
        %v516 = vmul.f32 %v515, %v296
        %v518 = vrot.slane %v516, 1
        %v520 = vadd.f32 %v514, %v518
        %v521 = vstv %s268
        %v522 = vmul.f32 %v521, %v296
        %v524 = vrot.slane %v522, 2
        %v526 = vadd.f32 %v520, %v524
        %v527 = vstv %s271
        %v528 = vmul.f32 %v527, %v296
        %v530 = vrot.slane %v528, 3
        %v532 = vadd.f32 %v526, %v530
        %v533 = vstv %s292
        %v534 = vadd.f32 %v532, %v533
        %v535 = vmax.f32 %v490, %v512
        %v536 = vmax.f32 %v535, %v534
        %v537 = vsub.f32 %v490, %v536
        %v538 = vmul.f32 %v537, 1.442695
        %v539 = vpow.pop %v538
        %v540 = vsub.f32 %v512, %v536
        %v541 = vmul.f32 %v540, 1.442695
        %v542 = vpow.pop %v541
        %v543 = vsub.f32 %v534, %v536
        %v544 = vmul.f32 %v543, 1.442695
        %v545 = vpow.pop %v544
        %v546 = vadd.f32 %v539, %v542
        %v547 = vadd.f32 %v546, %v545
        %v548 = vrcp.pop %v547
        %v549 = vmul.f32 %v539, %v548
        %v550 = vadd.f32 %v464, %v549
        %v551 = vmul.f32 %v542, %v548
        %v552 = vadd.f32 %v466, %v551
        %v553 = vmul.f32 %v545, %v548
        %v554 = vadd.f32 %v468, %v553
        %v555 = vstv %s272
        %v556 = vmul.f32 %v555, %v296
        %v557 = vstv %s275
        %v558 = vmul.f32 %v557, %v296
        %v560 = vrot.slane %v558, 1
        %v562 = vadd.f32 %v556, %v560
        %v563 = vstv %s278
        %v564 = vmul.f32 %v563, %v296
        %v566 = vrot.slane %v564, 2
        %v568 = vadd.f32 %v562, %v566
        %v569 = vstv %s281
        %v570 = vmul.f32 %v569, %v296
        %v572 = vrot.slane %v570, 3
        %v574 = vadd.f32 %v568, %v572
        %v575 = vstv %s293
        %v576 = vadd.f32 %v574, %v575
        %v577 = vstv %s273
        %v578 = vmul.f32 %v577, %v296
        %v579 = vstv %s276
        %v580 = vmul.f32 %v579, %v296
        %v582 = vrot.slane %v580, 1
        %v584 = vadd.f32 %v578, %v582
        %v585 = vstv %s279
        %v586 = vmul.f32 %v585, %v296
        %v588 = vrot.slane %v586, 2
        %v590 = vadd.f32 %v584, %v588
        %v591 = vstv %s282
        %v592 = vmul.f32 %v591, %v296
        %v594 = vrot.slane %v592, 3
        %v596 = vadd.f32 %v590, %v594
        %v597 = vstv %s294
        %v598 = vadd.f32 %v596, %v597
        %v599 = vstv %s274
        %v600 = vmul.f32 %v599, %v296
        %v601 = vstv %s277
        %v602 = vmul.f32 %v601, %v296
        %v604 = vrot.slane %v602, 1
        %v606 = vadd.f32 %v600, %v604
        %v607 = vstv %s280
        %v608 = vmul.f32 %v607, %v296
        %v610 = vrot.slane %v608, 2
        %v612 = vadd.f32 %v606, %v610
        %v613 = vstv %s283
        %v614 = vmul.f32 %v613, %v296
        %v616 = vrot.slane %v614, 3
        %v618 = vadd.f32 %v612, %v616
        %v619 = vstv %s295
        %v620 = vadd.f32 %v618, %v619
        %v621 = vmax.f32 %v576, %v598
        %v622 = vmax.f32 %v621, %v620
        %v623 = vsub.f32 %v576, %v622
        %v624 = vmul.f32 %v623, 1.442695
        %v625 = vpow.pop %v624
        %v626 = vsub.f32 %v598, %v622
        %v627 = vmul.f32 %v626, 1.442695
        %v628 = vpow.pop %v627
        %v629 = vsub.f32 %v620, %v622
        %v630 = vmul.f32 %v629, 1.442695
        %v631 = vpow.pop %v630
        %v632 = vadd.f32 %v625, %v628
        %v633 = vadd.f32 %v632, %v631
        %v634 = vrcp.pop %v633
        %v635 = vmul.f32 %v625, %v634
        %v636 = vadd.f32 %v550, %v635
        %v637 = vmul.f32 %v628, %v634
        %v638 = vadd.f32 %v552, %v637
        %v639 = vmul.f32 %v631, %v634
        %v640 = vadd.f32 %v554, %v639
        %v641 = vmul.f32 %v636, 0.25
        %vm642 = vcmask 122880
        %643 = vst.msk [vmem:[%s235] sm:$0x1] %vm642, %v641
        %v644 = vmul.f32 %v638, 0.25
        %645 = vst.msk [vmem:[%s235 + $0x1] sm:$0x1] %vm642, %v644
        %v646 = vmul.f32 %v640, 0.25
        %647 = vst.msk [vmem:[%s235 + $0x2] sm:$0x1] %vm642, %v646
        %p648 = scmp.lt.s32.totalorder %s23, 1
        %s649 = scalar_select %p648, %s23, 1
        %p650 = scmp.lt.s32.totalorder %s24, 0
        %s651 = scalar_select %p650, %s24, 0
        %s652 = sadd.s32 %s651, %s649
        %s653 = smul.addr %s652, 4
        %s654 = scalar_lea.vmem %s3, %s653
        // Predicated region
        $region45: #{tpu_custom_call.1} parent=31 // pred_check
          %p655 = pneg %p121
        $region46: #{tpu_custom_call.1} parent=31 // pred_check_branch
          %657 = sbr.rel (%p655) target = $region48
        $region47: #{tpu_custom_call.1} parent=31 // pred_region
          _
        $region48: #{tpu_custom_call.1} parent=31 // pred_fallthru
          _
      $region32: #{tpu_custom_call.1} parent=5 // pred_fallthru
        _
      %p658 = scmp.le.s32.totalorder 2, %s14
      // Predicated region
      $region49: #{tpu_custom_call.1} parent=5 // pred_check
        %p659 = pneg %p658
      $region50: #{tpu_custom_call.1} parent=5 // pred_check_branch
        %661 = sbr.rel (%p659) target = $region52
      $region51: #{tpu_custom_call.1} parent=5 // pred_region
        %s662 = ssub.s32 %s14, 2
        // Predicated region
        $region53: #{tpu_custom_call.1} parent=51 // pred_check
          %p663 = pneg %p127
        $region54: #{tpu_custom_call.1} parent=51 // pred_check_branch
          %665 = sbr.rel (%p663) target = $region56
        $region55: #{tpu_custom_call.1} parent=51 // pred_region
          %p666 = scmp.lt.s32.totalorder %s25, 1
          %s667 = scalar_select %p666, %s25, 1
          %p668 = scmp.lt.s32.totalorder %s26, 0
          %s669 = scalar_select %p668, %s26, 0
          %s670 = sadd.s32 %s669, %s667
          %s671 = smul.addr %s670, 4
          %s672 = scalar_lea.vmem %s3, %s671
        $region56: #{tpu_custom_call.1} parent=51 // pred_fallthru
          _
      $region52: #{tpu_custom_call.1} parent=5 // pred_fallthru
        _
    $region6: #{tpu_custom_call.1} parent=1 // loop_footer
      %s18 = sadd.s32 1, %s14
    $region7: #{tpu_custom_call.1} parent=1 // loop_footer_branch
      %13 = sbr.rel target = $region3
    $region8: #{tpu_custom_call.1} parent=1 // loop_exit
      _
    %673 = vsyncpa [#allocation3], 1
    %s674 = scalar_lea.sflag [#allocation3], 1
    %675 = vsyncpa %s674, 1
    %676 = vsyncpa [#allocation4], 1
    %s677 = scalar_lea.sflag [#allocation4], 1
    %678 = vsyncpa %s677, 1
    %679 = vsyncpa [#allocation7], 1

</llo_original>
